<compile_context>
chip_gen: v5e
topology: v5e:2x2
jax: 0.10.0
libtpu: 0.0.40
codegen_flags: <defaults>
</compile_context>

<pallas_src>
import functools

import jax
import jax.numpy as jnp
from jax import lax
from jax.experimental import pallas as pl
from jax.experimental.pallas import tpu as pltpu


def _maxk_pool_kernel(meta_ref, feat_ref, out_ref, topv_ref, *, k_max, chunk, unroll):
    """One (batch-tile, d-tile, seq-tile) step of streaming top-k mean pooling.

    meta_ref : (Bt, 128) float32 VMEM  -- col0: valid length, col1: effective k,
                                          col2: 1/effective k (rest padding)
    feat_ref : (Bt, Nt, Dt) VMEM       -- feature block
    out_ref  : (Bt, Dt) VMEM           -- pooled output (written on last seq step)
    topv_ref : (k_max, Bt, Dt) VMEM scratch -- running top-k values, sorted desc.
    """
    n = pl.program_id(2)
    bt, nt, dt = feat_ref.shape
    work_dt = topv_ref.dtype
    neg_inf = jnp.array(-jnp.inf, dtype=work_dt)

    @pl.when(n == 0)
    def _init():
        topv_ref[...] = jnp.full(topv_ref.shape, -jnp.inf, work_dt)

    meta = meta_ref[...]                                            # (Bt, 128) f32
    len_b = meta[:, 0:1].astype(jnp.int32).reshape(bt, 1, 1)        # (Bt,1,1) int32
    n_off = n * nt
    chunk_iota = lax.broadcasted_iota(jnp.int32, (1, chunk, 1), 1)  # hoisted

    tv0 = tuple(topv_ref[i] for i in range(k_max))                  # k_max x (Bt, Dt)

    trip = nt // chunk
    n_sub = unroll if (unroll > 1 and trip % unroll == 0 and trip >= unroll) else 1

    def chunk_body(c, tv):
        tv = list(tv)
        for s in range(n_sub):                                      # manual 2x unroll
            base = pl.multiple_of((c * n_sub + s) * chunk, chunk)
            xc = feat_ref[:, pl.ds(base, chunk), :].astype(work_dt)  # (Bt, chunk, Dt)
            row_ids = n_off + base + chunk_iota                      # (1, chunk, 1)
            xc = jnp.where(row_ids < len_b, xc, neg_inf)             # length mask
            for r in range(chunk):                                   # static unroll
                v = xc[:, r, :]                                      # (Bt, Dt)
                for i in range(k_max):                               # insertion network
                    hi = jnp.maximum(tv[i], v)
                    v = jnp.minimum(tv[i], v)
                    tv[i] = hi
        return tuple(tv)

    tv = lax.fori_loop(0, trip // n_sub, chunk_body, tv0)

    for i in range(k_max):
        topv_ref[i] = tv[i]

    @pl.when(n == pl.num_programs(2) - 1)
    def _finalize():
        kb = meta[:, 1:2].astype(jnp.int32)                          # (Bt, 1) int32
        inv_k = meta[:, 2:3]                                         # (Bt, 1) f32
        acc = jnp.zeros((bt, dt), jnp.float32)
        for i in range(k_max):
            acc = acc + jnp.where(i < kb, tv[i].astype(jnp.float32), 0.0)
        out_ref[...] = (acc * inv_k).astype(out_ref.dtype)


def _tpu_vmem_capacity_bytes():
    try:
        return int(pltpu.get_tpu_info().vmem_capacity_bytes)
    except Exception:
        return 128 << 20          # v5e / v6e default if the query is unavailable


def _is_v5e():
    try:
        kind = jax.devices()[0].device_kind.lower()
    except Exception:
        return False
    return ("v5e" in kind) or ("v5 lite" in kind) or ("v5litepod" in kind)


def maxk_pooling(features, lengths, k=2, *, batch_tile=8, seq_tile_bytes=None,
                 unroll=2):
    """Pallas implementation of Maxk_Pooling(dim=1, k=k).forward(features, lengths)."""
    B, N, D = features.shape
    itemsize = features.dtype.itemsize
    lengths = jnp.minimum(lengths.astype(jnp.int32), jnp.int32(N))

    # Reference quirk: `k = min(k, lengths[idx])` inside the python loop makes k a
    # running (cumulative) minimum over the batch.
    k_arr = jnp.minimum(jnp.int32(k), lax.cummin(lengths)).astype(jnp.int32)
    inv_k = 1.0 / k_arr.astype(jnp.float32)        # host-side; no in-kernel divide

    # Pack the per-batch scalars into ONE lane-dense f32 side input (one tiny DMA
    # per batch tile instead of three lane-sparse (Bt,1) blocks).
    meta = jnp.zeros((B, 128), jnp.float32)
    meta = meta.at[:, 0].set(lengths.astype(jnp.float32))
    meta = meta.at[:, 1].set(k_arr.astype(jnp.float32))
    meta = meta.at[:, 2].set(inv_k)

    # Working dtype for the compare/select network: native bf16 on v6e/v7x, f32
    # elsewhere (v5e has no bf16 VPU -> cast once per loaded chunk instead of per op).
    if features.dtype == jnp.bfloat16 and not _is_v5e():
        work_dt = jnp.bfloat16
    else:
        work_dt = jnp.float32

    Bt = min(int(batch_tile), B)                   # full output sublanes when B >= 8
    n_batch_tiles = pl.cdiv(B, Bt)

    # D tiling: keeps the streaming chunk at 8/16 rows for any D and provides a second
    # "parallel" grid axis so both v7x TensorCores get work when B fits one tile.
    Dt = D
    if D % 128 == 0:
        if D > 512:
            Dt = next(c for c in (512, 384, 256, 128) if D % c == 0)
        elif D >= 256 and D % 256 == 0 and n_batch_tiles == 1:
            Dt = D // 2

    # Generation-aware seq tile: target a large feature block (amortizes the ~0.35us
    # per-grid-step cost of this HBM-read-bound kernel) but keep the double-buffered
    # block well inside v7x's 64 MiB VMEM.
    vmem_cap = _tpu_vmem_capacity_bytes()
    if seq_tile_bytes is None:
        seq_tile_bytes = (16 << 20) if vmem_cap >= (100 << 20) else (8 << 20)

    row_align = 16 if itemsize <= 2 else 8         # bf16 packs 16 rows per vreg group
    nt_cap = max(row_align,
                 (int(seq_tile_bytes) // (Bt * Dt * itemsize)) // row_align * row_align)
    Nt = N if N <= nt_cap else nt_cap

    # In-kernel streaming chunk: byte-capped (not element-capped) so large D does not
    # collapse it; largest candidate that divides Nt (16 for bf16, 8 for f32).
    chunk_cands = (16, 8, 4, 2) if itemsize <= 2 else (8, 4, 2)
    chunk = 1
    for c in chunk_cands:
        if Nt % c == 0 and Bt * c * Dt * itemsize <= (128 << 10):
            chunk = c
            break

    # Explicit scoped-VMEM budget: 2x (double-buffered) blocks + scratch + margin.
    feat_block_bytes = Bt * Nt * Dt * itemsize
    out_block_bytes = Bt * Dt * itemsize
    scratch_bytes = int(k) * Bt * Dt * jnp.dtype(work_dt).itemsize
    meta_block_bytes = Bt * 128 * 4
    vmem_limit = (2 * feat_block_bytes + 2 * out_block_bytes + 2 * meta_block_bytes
                  + scratch_bytes + (4 << 20))
    vmem_limit = max(16 << 20, min(int(vmem_limit), int(0.75 * vmem_cap)))

    grid = (n_batch_tiles, pl.cdiv(D, Dt), pl.cdiv(N, Nt))
    kernel = functools.partial(_maxk_pool_kernel, k_max=int(k), chunk=chunk,
                               unroll=int(unroll))

    out = pl.pallas_call(
        kernel,
        out_shape=jax.ShapeDtypeStruct((B, D), features.dtype),
        grid=grid,
        in_specs=[
            pl.BlockSpec((Bt, 128), lambda b, d, n: (b, 0)),         # packed scalars
            pl.BlockSpec((Bt, Nt, Dt), lambda b, d, n: (b, n, d)),   # features
        ],
        out_specs=pl.BlockSpec((Bt, Dt), lambda b, d, n: (b, d)),
        scratch_shapes=[pltpu.VMEM((int(k), Bt, Dt), work_dt)],
        compiler_params=pltpu.CompilerParams(
            dimension_semantics=("parallel", "parallel", "arbitrary"),
            vmem_limit_bytes=int(vmem_limit)),
    )(meta, features)

    pooled_features = out
    pool_weights = None
    return pooled_features, pool_weights


def _reference(features, lengths, k=2):
    """Plain-JAX reference mirroring the PyTorch loop exactly (for validation)."""
    results = []
    kk = k
    for idx in range(features.shape[0]):
        ln = int(lengths[idx])
        kk = min(kk, ln)
        tmp = features[idx, :ln, :]                       # (ln, D)
        topk = lax.top_k(tmp.T.astype(jnp.float32), kk)[0]  # (D, kk)
        results.append(jnp.mean(topk, axis=-1))           # (D,)
    return jnp.stack(results, axis=0).astype(features.dtype)


if __name__ == "__main__":
    key = jax.random.PRNGKey(0)
    k1, k2 = jax.random.split(key)

    # Case 1: small shapes matching the module's intended use.
    B, N, D = 2, 8, 32
    k = 2
    features = jax.random.normal(k1, (B, N, D), dtype=jnp.float32)
    lengths = jnp.array([6, 8], dtype=jnp.int32)

    pooled, weights = maxk_pooling(features, lengths, k=k)
    pooled = jax.block_until_ready(pooled)
    ref = _reference(features, lengths, k=k)
    assert pooled.shape == (B, D)
    assert weights is None
    assert jnp.allclose(pooled, ref, atol=1e-5, rtol=1e-5)

    # Case 2: exercises seq tiling (multiple reduction steps + partial last block),
    # the D-tile parallel axis, the length mask and the per-row effective-k mask.
    B2, N2, D2 = 4, 40, 256
    k2_val = 3
    features2 = jax.random.normal(k2, (B2, N2, D2), dtype=jnp.float32)
    lengths2 = jnp.array([13, 40, 7, 29], dtype=jnp.int32)
    pooled2, _ = maxk_pooling(features2, lengths2, k=k2_val, seq_tile_bytes=32 << 10)
    pooled2 = jax.block_until_ready(pooled2)
    ref2 = _reference(features2, lengths2, k=k2_val)
    assert jnp.allclose(pooled2, ref2, atol=1e-5, rtol=1e-5)

    print("KERNEL_OK")
</pallas_src>

<mosaic_0001>
module attributes {stable_mosaic.version = 11 : i64} {
  func.func @_maxk_pool_kernel(%arg0: i32, %arg1: i32, %arg2: i32, %arg3: memref<2x128xf32, #tpu.memory_space<vmem>>, %arg4: memref<2x8x32xf32, #tpu.memory_space<vmem>>, %arg5: memref<2x32xf32, #tpu.memory_space<vmem>>, %arg6: memref<2x2x32xf32, #tpu.memory_space<vmem>>) attributes {dimension_semantics = [#tpu.dimension_semantics<parallel>, #tpu.dimension_semantics<parallel>, #tpu.dimension_semantics<arbitrary>], iteration_bounds = array<i64: 1, 1, 1>, scalar_prefetch = 0 : i64, scratch_operands = 1 : i64, tpu.core_type = #tpu.core_type<tc>, window_params = [{transform_indices = @transform_0, window_bounds = array<i64: 2, 128>}, {transform_indices = @transform_1, window_bounds = array<i64: 2, 8, 32>}, {transform_indices = @transform_2, window_bounds = array<i64: 2, 32>}]} {
    %c0_i32 = arith.constant 0 : i32
    %0 = arith.cmpi eq, %arg2, %c0_i32 : i32
    %1 = arith.extui %0 : i1 to i32
    %c0_i32_0 = arith.constant 0 : i32
    %2 = arith.cmpi ne, %1, %c0_i32_0 : i32
    scf.if %2 {
      %cst_21 = arith.constant 0xFF800000 : f32
      %78 = vector.broadcast %cst_21 : f32 to vector<2x2x32xf32>
      %c0_22 = arith.constant 0 : index
      %c0_23 = arith.constant 0 : index
      %c0_24 = arith.constant 0 : index
      %79 = vector.load %arg6[%c0_22, %c0_23, %c0_24] : memref<2x2x32xf32, #tpu.memory_space<vmem>>, vector<2x2x32xf32>
      tpu.vector_store %arg6[%c0_22, %c0_23, %c0_24], %78 {strides = array<i32>} : memref<2x2x32xf32, #tpu.memory_space<vmem>>, vector<2x2x32xf32>,
    } else {
    }
    %c0 = arith.constant 0 : index
    %c0_1 = arith.constant 0 : index
    %3 = vector.load %arg3[%c0, %c0_1] : memref<2x128xf32, #tpu.memory_space<vmem>>, vector<2x128xf32>
    %4 = vector.extract_strided_slice %3 {offsets = [0, 0], sizes = [2, 1], strides = [1, 1]} : vector<2x128xf32> to vector<2x1xf32>
    %5 = arith.fptosi %4 : vector<2x1xf32> to vector<2x1xi32>
    %6 = vector.shape_cast %5 : vector<2x1xi32> to vector<2x1x1xi32>
    %c8_i32 = arith.constant 8 : i32
    %7 = arith.muli %arg2, %c8_i32 : i32
    %8 = tpu.iota {dimensions = array<i32: 1>} : vector<1x8x1xi32>
    %c0_2 = arith.constant 0 : index
    %c0_3 = arith.constant 0 : index
    %c0_4 = arith.constant 0 : index
    %9 = vector.load %arg6[%c0_2, %c0_3, %c0_4] : memref<2x2x32xf32, #tpu.memory_space<vmem>>, vector<1x2x32xf32>
    %10 = vector.shape_cast %9 : vector<1x2x32xf32> to vector<2x32xf32>
    %c1 = arith.constant 1 : index
    %c0_5 = arith.constant 0 : index
    %c0_6 = arith.constant 0 : index
    %11 = vector.load %arg6[%c1, %c0_5, %c0_6] : memref<2x2x32xf32, #tpu.memory_space<vmem>>, vector<1x2x32xf32>
    %12 = vector.shape_cast %11 : vector<1x2x32xf32> to vector<2x32xf32>
    %cst = arith.constant 0xFF800000 : f32
    %c0_i32_7 = arith.constant 0 : i32
    %c1_i32 = arith.constant 1 : i32
    %13 = arith.muli %c0_i32_7, %c1_i32 : i32
    %c0_i32_8 = arith.constant 0 : i32
    %14 = arith.addi %13, %c0_i32_8 : i32
    %c8_i32_9 = arith.constant 8 : i32
    %15 = arith.muli %14, %c8_i32_9 : i32
    %16 = tpu.assume_multiple %15, 8 : i32
    %c0_10 = arith.constant 0 : index
    %17 = arith.index_cast %16 : i32 to index
    %c0_11 = arith.constant 0 : index
    %18 = vector.load %arg4[%c0_10, %17, %c0_11] : memref<2x8x32xf32, #tpu.memory_space<vmem>>, vector<2x8x32xf32>
    %19 = arith.addi %7, %16 : i32
    %20 = vector.broadcast %19 : i32 to vector<1x8x1xi32>
    %21 = arith.addi %20, %8 : vector<1x8x1xi32>
    %22 = vector.broadcast %21 : vector<1x8x1xi32> to vector<2x8x1xi32>
    %23 = vector.broadcast %6 : vector<2x1x1xi32> to vector<2x8x1xi32>
    %24 = arith.cmpi slt, %22, %23 : vector<2x8x1xi32>
    %25 = vector.shape_cast %24 : vector<2x8x1xi1> to vector<2x8x1xi1>
    %26 = vector.broadcast %25 : vector<2x8x1xi1> to vector<2x8x32xi1>
    %27 = vector.broadcast %cst : f32 to vector<2x8x32xf32>
    %28 = arith.select %26, %18, %27 : vector<2x8x32xi1>, vector<2x8x32xf32>
    %29 = vector.extract_strided_slice %28 {offsets = [0, 0, 0], sizes = [2, 1, 32], strides = [1, 1, 1]} : vector<2x8x32xf32> to vector<2x1x32xf32>
    %30 = vector.shape_cast %29 : vector<2x1x32xf32> to vector<2x32xf32>
    %31 = arith.maximumf %10, %30 : vector<2x32xf32>
    %32 = arith.minimumf %10, %30 : vector<2x32xf32>
    %33 = arith.maximumf %12, %32 : vector<2x32xf32>
    %34 = vector.extract_strided_slice %28 {offsets = [0, 1, 0], sizes = [2, 1, 32], strides = [1, 1, 1]} : vector<2x8x32xf32> to vector<2x1x32xf32>
    %35 = vector.shape_cast %34 : vector<2x1x32xf32> to vector<2x32xf32>
    %36 = arith.maximumf %31, %35 : vector<2x32xf32>
    %37 = arith.minimumf %31, %35 : vector<2x32xf32>
    %38 = arith.maximumf %33, %37 : vector<2x32xf32>
    %39 = vector.extract_strided_slice %28 {offsets = [0, 2, 0], sizes = [2, 1, 32], strides = [1, 1, 1]} : vector<2x8x32xf32> to vector<2x1x32xf32>
    %40 = vector.shape_cast %39 : vector<2x1x32xf32> to vector<2x32xf32>
    %41 = arith.maximumf %36, %40 : vector<2x32xf32>
    %42 = arith.minimumf %36, %40 : vector<2x32xf32>
    %43 = arith.maximumf %38, %42 : vector<2x32xf32>
    %44 = vector.extract_strided_slice %28 {offsets = [0, 3, 0], sizes = [2, 1, 32], strides = [1, 1, 1]} : vector<2x8x32xf32> to vector<2x1x32xf32>
    %45 = vector.shape_cast %44 : vector<2x1x32xf32> to vector<2x32xf32>
    %46 = arith.maximumf %41, %45 : vector<2x32xf32>
    %47 = arith.minimumf %41, %45 : vector<2x32xf32>
    %48 = arith.maximumf %43, %47 : vector<2x32xf32>
    %49 = vector.extract_strided_slice %28 {offsets = [0, 4, 0], sizes = [2, 1, 32], strides = [1, 1, 1]} : vector<2x8x32xf32> to vector<2x1x32xf32>
    %50 = vector.shape_cast %49 : vector<2x1x32xf32> to vector<2x32xf32>
    %51 = arith.maximumf %46, %50 : vector<2x32xf32>
    %52 = arith.minimumf %46, %50 : vector<2x32xf32>
    %53 = arith.maximumf %48, %52 : vector<2x32xf32>
    %54 = vector.extract_strided_slice %28 {offsets = [0, 5, 0], sizes = [2, 1, 32], strides = [1, 1, 1]} : vector<2x8x32xf32> to vector<2x1x32xf32>
    %55 = vector.shape_cast %54 : vector<2x1x32xf32> to vector<2x32xf32>
    %56 = arith.maximumf %51, %55 : vector<2x32xf32>
    %57 = arith.minimumf %51, %55 : vector<2x32xf32>
    %58 = arith.maximumf %53, %57 : vector<2x32xf32>
    %59 = vector.extract_strided_slice %28 {offsets = [0, 6, 0], sizes = [2, 1, 32], strides = [1, 1, 1]} : vector<2x8x32xf32> to vector<2x1x32xf32>
    %60 = vector.shape_cast %59 : vector<2x1x32xf32> to vector<2x32xf32>
    %61 = arith.maximumf %56, %60 : vector<2x32xf32>
    %62 = arith.minimumf %56, %60 : vector<2x32xf32>
    %63 = arith.maximumf %58, %62 : vector<2x32xf32>
    %64 = vector.extract_strided_slice %28 {offsets = [0, 7, 0], sizes = [2, 1, 32], strides = [1, 1, 1]} : vector<2x8x32xf32> to vector<2x1x32xf32>
    %65 = vector.shape_cast %64 : vector<2x1x32xf32> to vector<2x32xf32>
    %66 = arith.maximumf %61, %65 : vector<2x32xf32>
    %67 = arith.minimumf %61, %65 : vector<2x32xf32>
    %68 = arith.maximumf %63, %67 : vector<2x32xf32>
    %c1_i32_12 = arith.constant 1 : i32
    %c0_13 = arith.constant 0 : index
    %c0_14 = arith.constant 0 : index
    %c0_15 = arith.constant 0 : index
    %69 = vector.load %arg6[%c0_13, %c0_14, %c0_15] : memref<2x2x32xf32, #tpu.memory_space<vmem>>, vector<1x2x32xf32>
    %70 = vector.shape_cast %69 : vector<1x2x32xf32> to vector<2x32xf32>
    %71 = vector.shape_cast %66 : vector<2x32xf32> to vector<1x2x32xf32>
    tpu.vector_store %arg6[%c0_13, %c0_14, %c0_15], %71 {strides = array<i32>} : memref<2x2x32xf32, #tpu.memory_space<vmem>>, vector<1x2x32xf32>,
    %c1_16 = arith.constant 1 : index
    %c0_17 = arith.constant 0 : index
    %c0_18 = arith.constant 0 : index
    %72 = vector.load %arg6[%c1_16, %c0_17, %c0_18] : memref<2x2x32xf32, #tpu.memory_space<vmem>>, vector<1x2x32xf32>
    %73 = vector.shape_cast %72 : vector<1x2x32xf32> to vector<2x32xf32>
    %74 = vector.shape_cast %68 : vector<2x32xf32> to vector<1x2x32xf32>
    tpu.vector_store %arg6[%c1_16, %c0_17, %c0_18], %74 {strides = array<i32>} : memref<2x2x32xf32, #tpu.memory_space<vmem>>, vector<1x2x32xf32>,
    %c0_i32_19 = arith.constant 0 : i32
    %75 = arith.cmpi eq, %arg2, %c0_i32_19 : i32
    %76 = arith.extui %75 : i1 to i32
    %c0_i32_20 = arith.constant 0 : i32
    %77 = arith.cmpi ne, %76, %c0_i32_20 : i32
    scf.if %77 {
      %78 = vector.extract_strided_slice %3 {offsets = [0, 1], sizes = [2, 1], strides = [1, 1]} : vector<2x128xf32> to vector<2x1xf32>
      %79 = arith.fptosi %78 : vector<2x1xf32> to vector<2x1xi32>
      %80 = vector.extract_strided_slice %3 {offsets = [0, 2], sizes = [2, 1], strides = [1, 1]} : vector<2x128xf32> to vector<2x1xf32>
      %cst_21 = arith.constant 0.000000e+00 : f32
      %81 = vector.broadcast %cst_21 : f32 to vector<2x32xf32>
      %c0_i32_22 = arith.constant 0 : i32
      %82 = vector.broadcast %c0_i32_22 : i32 to vector<2x1xi32>
      %83 = arith.cmpi sgt, %79, %82 : vector<2x1xi32>
      %cst_23 = arith.constant 0.000000e+00 : f32
      %84 = vector.shape_cast %83 : vector<2x1xi1> to vector<2x1xi1>
      %85 = vector.broadcast %84 : vector<2x1xi1> to vector<2x32xi1>
      %86 = vector.broadcast %cst_23 : f32 to vector<2x32xf32>
      %87 = arith.select %85, %66, %86 : vector<2x32xi1>, vector<2x32xf32>
      %88 = arith.addf %81, %87 : vector<2x32xf32>
      %c1_i32_24 = arith.constant 1 : i32
      %89 = vector.broadcast %c1_i32_24 : i32 to vector<2x1xi32>
      %90 = arith.cmpi sgt, %79, %89 : vector<2x1xi32>
      %cst_25 = arith.constant 0.000000e+00 : f32
      %91 = vector.shape_cast %90 : vector<2x1xi1> to vector<2x1xi1>
      %92 = vector.broadcast %91 : vector<2x1xi1> to vector<2x32xi1>
      %93 = vector.broadcast %cst_25 : f32 to vector<2x32xf32>
      %94 = arith.select %92, %68, %93 : vector<2x32xi1>, vector<2x32xf32>
      %95 = arith.addf %88, %94 : vector<2x32xf32>
      %96 = vector.broadcast %80 : vector<2x1xf32> to vector<2x32xf32>
      %97 = arith.mulf %95, %96 : vector<2x32xf32>
      %c0_26 = arith.constant 0 : index
      %c0_27 = arith.constant 0 : index
      %98 = vector.load %arg5[%c0_26, %c0_27] : memref<2x32xf32, #tpu.memory_space<vmem>>, vector<2x32xf32>
      tpu.vector_store %arg5[%c0_26, %c0_27], %97 {strides = array<i32>} : memref<2x32xf32, #tpu.memory_space<vmem>>, vector<2x32xf32>,
    } else {
    }
    return
  }
  func.func @transform_0(%arg0: i32, %arg1: i32, %arg2: i32) -> (i32, i32) {
    %c0_i32 = arith.constant 0 : i32
    %c0_i32_0 = arith.constant 0 : i32
    return %arg0, %c0_i32 : i32, i32
  }
  func.func @transform_1(%arg0: i32, %arg1: i32, %arg2: i32) -> (i32, i32, i32) {
    %c0_i32 = arith.constant 0 : i32
    return %arg0, %arg2, %arg1 : i32, i32, i32
  }
  func.func @transform_2(%arg0: i32, %arg1: i32, %arg2: i32) -> (i32, i32) {
    %c0_i32 = arith.constant 0 : i32
    return %arg0, %arg1 : i32, i32
  }
}

</mosaic_0001>

<llo_original>
// kernel: tpu_custom_call.1
$region0: #{tpu_custom_call.1}
  #allocation0 [shape = 'u32[]', space=smem, size = 0x4, offset = 0x4, fixed_abs, tag = 'smem constant byte address 0x4 - core index']
  #allocation1 [shape = 'u32[72,128]{1,0:T(1,128)}', space=vmem, size = 0x9000, scoped, tag = 'internal scratch']
  #allocation2 [shape = 'f32[2,2,32]{2,1,0:T(2,128)}', space=vmem, size = 0x800, scoped, tag = 'scratch operand']
  %s0 = inlined_call_operand.hbm [shape: f32[2,128], index: 0, kind: input, shape index: {}]
  %s1 = inlined_call_operand.hbm [shape: f32[2,8,32], index: 1, kind: input, shape index: {}]
  %s2 = inlined_call_operand.hbm [shape: f32[2,32], index: 2, kind: output, shape index: {}]
  %s3 = sld [smem:[#allocation0]]
  $region34: #{tpu_custom_call.1} parent=0
    _
  %s5 = ssub.s32 1, %s3
  %s6 = scalar_select 0, %s5, %s3
  $region1: #{tpu_custom_call.1} parent=0
    #allocation3 [shape = 'u8[1024]{0}', space=vmem, size = 0x400, scoped, tag = 'input window, operand 0, single buffered']
    #allocation4 [shape = 's32[1]{0}', space=sflag, size = 0x4, scoped, tag = 'scoped memory for tpu_custom_call.1']
    #allocation5 [shape = 's32[1]{0}', space=sflag, size = 0x4, scoped, tag = 'scoped memory for tpu_custom_call.1']
    #allocation6 [shape = 'u8[8192]{0}', space=vmem, size = 0x2000, scoped, tag = 'input window, operand 1, single buffered']
    #allocation7 [shape = 's32[1]{0}', space=sflag, size = 0x4, scoped, tag = 'scoped memory for tpu_custom_call.1']
    #allocation8 [shape = 'u8[1024]{0}', space=vmem, size = 0x400, scoped, tag = 'output window, operand 0, single buffered']
    %7 = vsyncpa [#allocation4], 0
    %8 = vsyncpa [#allocation7], 0
    %9 = vsyncpa [#allocation5], 0
    // Predicated region
    $region2: #{tpu_custom_call.1} parent=1 // pred_check
      _
    $region3: #{tpu_custom_call.1} parent=1 // pred_check_branch
      %11 = sbr.rel (0) target = $region5
    $region4: #{tpu_custom_call.1} parent=1 // pred_region
      %13 = vsyncadd [#allocation4], 0
      %s15 = sshll.u32 %s0, 4
      %s16 = int_to_ptr.hbm [resolvable:$true] %s15
      %s17 = sshll.u32 [#allocation3], 4
      %s18 = int_to_ptr.vmem [resolvable:$true] %s17
      %20 = dma.hbm_to_vmem [thread:$0]  %s16, 32, %s18, [#allocation4]
    $region5: #{tpu_custom_call.1} parent=1 // pred_fallthru
      _
    // Predicated region
    $region6: #{tpu_custom_call.1} parent=1 // pred_check
      _
    $region7: #{tpu_custom_call.1} parent=1 // pred_check_branch
      %22 = sbr.rel (0) target = $region9
    $region8: #{tpu_custom_call.1} parent=1 // pred_region
      %24 = vsyncadd [#allocation7], 0
      %s25 = sshll.u32 %s1, 4
      %s26 = int_to_ptr.hbm [resolvable:$true] %s25
      %s27 = sshll.u32 [#allocation6], 4
      %s28 = int_to_ptr.vmem [resolvable:$true] %s27
      %33 = dma.hbm_to_vmem [thread:$0]  %s26, 256, %s28, [#allocation7], 128, 128, 8
    $region9: #{tpu_custom_call.1} parent=1 // pred_fallthru
      _
    // Predicated region
    $region10: #{tpu_custom_call.1} parent=1 // pred_check
      _
    $region11: #{tpu_custom_call.1} parent=1 // pred_check_branch
      %35 = sbr.rel (0) target = $region13
    $region12: #{tpu_custom_call.1} parent=1 // pred_region
      %37 = dma.done [#allocation4], 32
    $region13: #{tpu_custom_call.1} parent=1 // pred_fallthru
      _
    // Predicated region
    $region14: #{tpu_custom_call.1} parent=1 // pred_check
      _
    $region15: #{tpu_custom_call.1} parent=1 // pred_check_branch
      %39 = sbr.rel (0) target = $region17
    $region16: #{tpu_custom_call.1} parent=1 // pred_region
      %41 = dma.done [#allocation7], 256
    $region17: #{tpu_custom_call.1} parent=1 // pred_fallthru
      _
    %p42 = scmp.eq.s32.totalorder 0, 0
    // Predicated region
    $region18: #{tpu_custom_call.1} parent=1 // pred_check
      %p43 = pneg %p42
    $region19: #{tpu_custom_call.1} parent=1 // pred_check_branch
      %45 = sbr.rel (%p43) target = $region21
    $region20: #{tpu_custom_call.1} parent=1 // pred_region
      %vm46 = vcmask 254976
      %47 = vst.msk [vmem:[#allocation2] sm:$0x3] %vm46, -inf
      %48 = vst.msk [vmem:[#allocation2 + $0x2] sm:$0x3] %vm46, -inf
    $region21: #{tpu_custom_call.1} parent=1 // pred_fallthru
      _
    %v49 = vld [vmem:[#allocation3] sm:$0x3]
    %v50 = vcvt.f32.s32.to.zero.pseudo %v49
    %v51 = vrot.slane %v50, 1
    %s52 = smul.u32 0, 8
    %v53 = vlaneseq
    %v54 = vshrl.u32 %v53, 7
    %v55 = vld [vmem:[#allocation2] sm:$0x3]
    %s56 = scalar_lea.vmem [#allocation2], 2
    %v57 = vld [vmem:[%s56] sm:$0x3]
    %v58 = vld [vmem:[#allocation6] sm:$0xff]
    %v59 = vld [vmem:[#allocation6 + $0x8] sm:$0xff]
    %s60 = sadd.s32 %s52, 0
    %v61 = vstv %s60
    %v62 = vadd.s32 %v61, %v54
    %v63 = vperm.slane %v50, 0
    %v64 = vperm.slane %v51, 0
    %vm65 = vcmp.lt.s32.totalorder %v62, %v63
    %vm66 = vcmp.lt.s32.totalorder %v62, %v64
    %v67 = vsel %vm65, 1, 0
    %v68 = vsel %vm66, 1, 0
    %69 = vset.pattern.permute.xlu0 0
    %70 = vperm.xlu0 %69, %v67
    %v71 = vpop.permute.xlu0 %70
    %72 = vset.pattern.permute.xlu0 0
    %73 = vperm.xlu0 %72, %v68
    %v74 = vpop.permute.xlu0 %73
    %vm75 = vcmp.eq.s32.totalorder %v71, 1
    %vm76 = vcmp.eq.s32.totalorder %v74, 1
    %v77 = vsel %vm75, %v58, -inf
    %v78 = vsel %vm76, %v59, -inf
    %v81 = vrot.slane %v78, 7
    %vm82 = vcmask 1041409
    %v83 = vsel %vm82, %v81, %v77
    %v85 = vmax.f32 %v55, %v83
    %v86 = vmin.f32 %v55, %v83
    %v87 = vmax.f32 %v57, %v86
    %v88 = vrot.slane %v77, 1
    %v89 = vsel %vm82, %v78, %v88
    %v91 = vmax.f32 %v85, %v89
    %v92 = vmin.f32 %v85, %v89
    %v93 = vmax.f32 %v87, %v92
    %v94 = vrot.slane %v77, 2
    %v95 = vrot.slane %v78, 1
    %v96 = vsel %vm82, %v95, %v94
    %v98 = vmax.f32 %v91, %v96
    %v99 = vmin.f32 %v91, %v96
    %v100 = vmax.f32 %v93, %v99
    %v101 = vrot.slane %v77, 3
    %v102 = vrot.slane %v78, 2
    %v103 = vsel %vm82, %v102, %v101
    %v105 = vmax.f32 %v98, %v103
    %v106 = vmin.f32 %v98, %v103
    %v107 = vmax.f32 %v100, %v106
    %v108 = vrot.slane %v77, 4
    %v109 = vrot.slane %v78, 3
    %v110 = vsel %vm82, %v109, %v108
    %v112 = vmax.f32 %v105, %v110
    %v113 = vmin.f32 %v105, %v110
    %v114 = vmax.f32 %v107, %v113
    %v115 = vrot.slane %v77, 5
    %v116 = vrot.slane %v78, 4
    %v117 = vsel %vm82, %v116, %v115
    %v119 = vmax.f32 %v112, %v117
    %v120 = vmin.f32 %v112, %v117
    %v121 = vmax.f32 %v114, %v120
    %v122 = vrot.slane %v77, 6
    %v123 = vrot.slane %v78, 5
    %v124 = vsel %vm82, %v123, %v122
    %v126 = vmax.f32 %v119, %v124
    %v127 = vmin.f32 %v119, %v124
    %v128 = vmax.f32 %v121, %v127
    %v129 = vrot.slane %v77, 7
    %v130 = vrot.slane %v78, 6
    %v131 = vsel %vm82, %v130, %v129
    %v133 = vmax.f32 %v126, %v131
    %v134 = vmin.f32 %v126, %v131
    %v135 = vmax.f32 %v128, %v134
    %vm136 = vcmask 254976
    %137 = vst.msk [vmem:[#allocation2] sm:$0x3] %vm136, %v133
    %138 = vst.msk [vmem:[%s56] sm:$0x3] %vm136, %v135
    // Predicated region
    $region22: #{tpu_custom_call.1} parent=1 // pred_check
      %p139 = pneg %p42
    $region23: #{tpu_custom_call.1} parent=1 // pred_check_branch
      %141 = sbr.rel (%p139) target = $region25
    $region24: #{tpu_custom_call.1} parent=1 // pred_region
      %vm142 = vcmp.gt.s32.totalorder %v50, 0
      %v143 = vsel %vm142, 1, 0
      %144 = vset.pattern.permute.xlu0 1
      %145 = vperm.xlu0 %144, %v143
      %v146 = vpop.permute.xlu0 %145
      %vm147 = vcmp.eq.s32.totalorder %v146, 1
      %v148 = vsel %vm147, %v133, 0.0
      %v149 = vadd.f32 %v148, 0.0
      %vm150 = vcmp.gt.s32.totalorder %v50, 1
      %v151 = vsel %vm150, 1, 0
      %152 = vset.pattern.permute.xlu0 1
      %153 = vperm.xlu0 %152, %v151
      %v154 = vpop.permute.xlu0 %153
      %vm155 = vcmp.eq.s32.totalorder %v154, 1
      %v156 = vsel %vm155, %v135, 0.0
      %v157 = vadd.f32 %v149, %v156
      %159 = vset.pattern.permute.xlu0 2
      %160 = vperm.xlu0 %159, %v49
      %v161 = vpop.permute.xlu0 %160
      %v163 = vmul.f32 %v157, %v161
      %164 = vst.msk [vmem:[#allocation8] sm:$0x3] %vm136, %v163
    $region25: #{tpu_custom_call.1} parent=1 // pred_fallthru
      _
    // Predicated region
    $region26: #{tpu_custom_call.1} parent=1 // pred_check
      _
    $region27: #{tpu_custom_call.1} parent=1 // pred_check_branch
      %166 = sbr.rel (0) target = $region29
    $region28: #{tpu_custom_call.1} parent=1 // pred_region
      %168 = vsyncadd [#allocation5], 0
      %s170 = sshll.u32 [#allocation8], 4
      %s171 = int_to_ptr.vmem [resolvable:$true] %s170
      %s172 = sshll.u32 %s2, 4
      %s173 = int_to_ptr.hbm [resolvable:$true] %s172
      %175 = dma.vmem_to_hbm [thread:$0]  %s171, 32, %s173, [#allocation5]
    $region29: #{tpu_custom_call.1} parent=1 // pred_fallthru
      _
    // Predicated region
    $region30: #{tpu_custom_call.1} parent=1 // pred_check
      _
    $region31: #{tpu_custom_call.1} parent=1 // pred_check_branch
      %177 = sbr.rel (0) target = $region33
    $region32: #{tpu_custom_call.1} parent=1 // pred_region
      %179 = dma.done [#allocation5], 32
    $region33: #{tpu_custom_call.1} parent=1 // pred_fallthru
      _
    %180 = vsyncpa [#allocation4], 1
    %181 = vsyncpa [#allocation7], 1
    %182 = vsyncpa [#allocation5], 1

</llo_original>
